<compile_context>
chip_gen: v7x
topology: tpu7x:2x2x1
jax: 0.10.0
libtpu: 0.0.40
codegen_flags: <defaults>
</compile_context>

<pallas_src>
import jax
import jax.numpy as jnp
from jax import lax
from jax.experimental import pallas as pl
from jax.experimental.pallas import tpu as pltpu


def _round_up(x, m):
    return ((x + m - 1) // m) * m


def _proj_kernel(p_ref, w_ref, o_ref):
    # p_ref: (tm, Kp) row tile of patches; w_ref: (Kp, tn) resident weight tile;
    # o_ref: (tm, tn) output tile. Accumulate in f32 on the MXU.
    o_ref[...] = jnp.dot(
        p_ref[...], w_ref[...], preferred_element_type=jnp.float32
    ).astype(o_ref.dtype)


def _choose_tiles(M, Kp, Np, itemsize, budget):
    """Pick (tm, tn): tn is the widest lane-dense weight tile whose
    double-buffered block uses at most half the budget; tm is the largest row
    tile (<=1024, multiple of 8, <= M rounded to the sublane granule) whose
    total double-buffered working set fits the budget."""
    tn = Np
    while tn > 128 and 2 * Kp * tn * itemsize > budget // 2:
        tn = _round_up(tn // 2, 128)

    m_cap = _round_up(M, 8)
    for tm in (1024, 512, 256, 128, 64, 32, 16, 8):
        if tm > m_cap:
            continue
        need = 2 * (tm * Kp + Kp * tn + tm * tn) * itemsize
        if need <= budget:
            return tm, tn
    return 8, tn


def patch_embed(x, weight, patch_size):
    """x: (B, C, H, W); weight: (dim, C, P, P) in PyTorch OIHW layout.

    Returns (B, num_patches, dim), matching
    PatchEmbed.forward: proj(x).flatten(2).transpose(1, 2).
    """
    B, C, H, W = x.shape
    P = patch_size
    dim = weight.shape[0]
    if H % P != 0 or W % P != 0:
        raise ValueError(f"H={H}, W={W} must be divisible by patch_size={P}")
    if weight.shape != (dim, C, P, P):
        raise ValueError(f"weight shape {weight.shape} != {(dim, C, P, P)}")

    nH, nW = H // P, W // P
    M = B * nH * nW
    K = C * P * P

    # Each row is one patch flattened in (C, ph, pw) order to match the OIHW
    # conv-weight flattening.
    patches = (
        x.reshape(B, C, nH, P, nW, P)
        .transpose(0, 2, 4, 1, 3, 5)          # (B, nH, nW, C, P, P)
        .reshape(M, K)
    )
    w2 = weight.reshape(dim, K).T              # (K, dim)

    # Lane/sublane alignment: last dims -> multiples of 128.
    Kp = _round_up(K, 128)
    Np = _round_up(dim, 128)

    itemsize = jnp.dtype(x.dtype).itemsize
    # Budget against the tightest generation with headroom for pipeline internals.
    vmem_budget = 28 * 1024 * 1024
    tm, tn = _choose_tiles(M, Kp, Np, itemsize, vmem_budget)

    Mp = _round_up(M, tm)
    Np2 = _round_up(Np, tn)

    patches_p = jnp.pad(patches, ((0, Mp - M), (0, Kp - K)))
    w_p = jnp.pad(w2, ((0, Kp - K), (0, Np2 - dim))).astype(x.dtype)

    grid = (Np2 // tn, Mp // tm)               # N-tiles outer, M-tiles inner

    need_bytes = 2 * (tm * Kp + Kp * tn + tm * tn) * itemsize
    vmem_limit = int(min(max(need_bytes + (4 << 20), 16 << 20), 48 << 20))

    cost = pl.CostEstimate(
        flops=2 * M * K * dim,
        transcendentals=0,
        bytes_accessed=itemsize * (M * K + K * dim + M * dim),
    )

    out = pl.pallas_call(
        _proj_kernel,
        out_shape=jax.ShapeDtypeStruct((Mp, Np2), x.dtype),
        grid=grid,
        in_specs=[
            # Row tiles stream (pipelined); block index constant across j.
            pl.BlockSpec((tm, Kp), lambda j, i: (i, 0)),
            # Weight tile constant across the inner M loop -> fetched once per j.
            pl.BlockSpec((Kp, tn), lambda j, i: (0, j)),
        ],
        out_specs=pl.BlockSpec((tm, tn), lambda j, i: (i, j)),
        compiler_params=pltpu.CompilerParams(
            dimension_semantics=("parallel", "parallel"),
            vmem_limit_bytes=vmem_limit,
        ),
        cost_estimate=cost,
    )(patches_p, w_p)

    return out[:M, :dim].reshape(B, nH * nW, dim)


def _reference(x, weight, patch_size):
    B = x.shape[0]
    dim = weight.shape[0]
    ref = lax.conv_general_dilated(
        x, weight,
        window_strides=(patch_size, patch_size),
        padding="VALID",
        dimension_numbers=("NCHW", "OIHW", "NCHW"),
        precision=lax.Precision.HIGHEST,
    )
    return ref.reshape(B, dim, -1).transpose(0, 2, 1)


if __name__ == "__main__":
    # Primary small shapes consistent with the module: image 16x16, patch 4,
    # C=4, dim=32 (exercises K- and dim-padding to 128 lanes).
    B, C, H, W = 2, 4, 16, 16
    patch_size = 4
    dim = 32

    key = jax.random.PRNGKey(0)
    kx, kw, kx2, kw2 = jax.random.split(key, 4)
    x = jax.random.normal(kx, (B, C, H, W), dtype=jnp.float32)
    weight = jax.random.normal(
        kw, (dim, C, patch_size, patch_size), dtype=jnp.float32) * 0.02

    out = jax.block_until_ready(patch_embed(x, weight, patch_size))
    ref = _reference(x, weight, patch_size)
    assert out.shape == (B, (H // patch_size) * (W // patch_size), dim)
    assert jnp.allclose(out, ref, atol=2e-3, rtol=2e-3), float(
        jnp.max(jnp.abs(out - ref)))

    # Secondary check: M not a multiple of the row tile and dim not a multiple
    # of 128 (exercises M-padding + output slicing).
    B2, C2, H2, W2, P2, dim2 = 3, 3, 24, 24, 4, 40
    x2 = jax.random.normal(kx2, (B2, C2, H2, W2), dtype=jnp.float32)
    w2 = jax.random.normal(kw2, (dim2, C2, P2, P2), dtype=jnp.float32) * 0.02
    out2 = jax.block_until_ready(patch_embed(x2, w2, P2))
    ref2 = _reference(x2, w2, P2)
    assert out2.shape == (B2, (H2 // P2) * (W2 // P2), dim2)
    assert jnp.allclose(out2, ref2, atol=2e-3, rtol=2e-3), float(
        jnp.max(jnp.abs(out2 - ref2)))

    print("KERNEL_OK")
</pallas_src>

<mosaic_0001>
module attributes {stable_mosaic.version = 11 : i64} {
  func.func @_proj_kernel(%arg0: i32, %arg1: i32, %arg2: memref<32x128xf32, #tpu.memory_space<vmem>>, %arg3: memref<128x128xf32, #tpu.memory_space<vmem>>, %arg4: memref<32x128xf32, #tpu.memory_space<vmem>>) attributes {dimension_semantics = [#tpu.dimension_semantics<parallel>, #tpu.dimension_semantics<parallel>], iteration_bounds = array<i64: 1, 1>, scalar_prefetch = 0 : i64, scratch_operands = 0 : i64, tpu.core_type = #tpu.core_type<tc>, window_params = [{transform_indices = @transform_0, window_bounds = array<i64: 32, 128>}, {transform_indices = @transform_1, window_bounds = array<i64: 128, 128>}, {transform_indices = @transform_2, window_bounds = array<i64: 32, 128>}]} {
    %c0 = arith.constant 0 : index
    %c0_0 = arith.constant 0 : index
    %0 = vector.load %arg2[%c0, %c0_0] : memref<32x128xf32, #tpu.memory_space<vmem>>, vector<32x128xf32>
    %c0_1 = arith.constant 0 : index
    %c0_2 = arith.constant 0 : index
    %1 = vector.load %arg3[%c0_1, %c0_2] : memref<128x128xf32, #tpu.memory_space<vmem>>, vector<128x128xf32>
    %cst = arith.constant dense<0.000000e+00> : vector<32x128xf32>
    %2 = tpu.matmul %0, %1, %cst {dimension_numbers = #tpu.dot_dimension_numbers<[1], [0], [0], [1], [0, 0, 1, 1], [], []>} : vector<32x128xf32>, vector<128x128xf32>, vector<32x128xf32> -> vector<32x128xf32>
    %c0_3 = arith.constant 0 : index
    %c0_4 = arith.constant 0 : index
    %3 = vector.load %arg4[%c0_3, %c0_4] : memref<32x128xf32, #tpu.memory_space<vmem>>, vector<32x128xf32>
    tpu.vector_store %arg4[%c0_3, %c0_4], %2 {strides = array<i32>} : memref<32x128xf32, #tpu.memory_space<vmem>>, vector<32x128xf32>,
    return
  }
  func.func @transform_0(%arg0: i32, %arg1: i32) -> (i32, i32) {
    %c0_i32 = arith.constant 0 : i32
    %c0_i32_0 = arith.constant 0 : i32
    return %arg1, %c0_i32 : i32, i32
  }
  func.func @transform_1(%arg0: i32, %arg1: i32) -> (i32, i32) {
    %c0_i32 = arith.constant 0 : i32
    %c0_i32_0 = arith.constant 0 : i32
    return %c0_i32, %arg0 : i32, i32
  }
  func.func @transform_2(%arg0: i32, %arg1: i32) -> (i32, i32) {
    %c0_i32 = arith.constant 0 : i32
    return %arg1, %arg0 : i32, i32
  }
}

</mosaic_0001>

<llo_original>
// kernel: tpu_custom_call.1
$region0: #{tpu_custom_call.1}
  #allocation0 [shape = 'u32[]', space=smem, size = 0x4, offset = 0x4, fixed_abs, tag = 'smem constant byte address 0x4 - core index']
  #allocation1 [shape = 'u32[144,128]{1,0:T(1,128)}', space=vmem, size = 0x12000, scoped, tag = 'internal scratch']
  %s0 = inlined_call_operand.hbm [shape: f32[32,128], index: 0, kind: input, shape index: {}]
  %s1 = inlined_call_operand.hbm [shape: f32[128,128], index: 1, kind: input, shape index: {}]
  %s2 = inlined_call_operand.hbm [shape: f32[32,128], index: 2, kind: output, shape index: {}]
  %s3 = sld [smem:[#allocation0]]
  $region26: #{tpu_custom_call.1} parent=0
    _
  %s5 = ssub.s32 1, %s3
  %s6 = scalar_select 0, %s5, %s3
  $region1: #{tpu_custom_call.1} parent=0
    #allocation2 [shape = 'u8[16384]{0}', space=vmem, size = 0x4000, scoped, tag = 'input window, operand 0, single buffered']
    #allocation3 [shape = 's32[1]{0}', space=sflag, size = 0x4, scoped, tag = 'scoped memory for tpu_custom_call.1']
    #allocation4 [shape = 's32[1]{0}', space=sflag, size = 0x4, scoped, tag = 'scoped memory for tpu_custom_call.1']
    #allocation5 [shape = 'u8[65536]{0}', space=vmem, size = 0x10000, scoped, tag = 'input window, operand 1, single buffered']
    #allocation6 [shape = 's32[1]{0}', space=sflag, size = 0x4, scoped, tag = 'scoped memory for tpu_custom_call.1']
    #allocation7 [shape = 'u8[16384]{0}', space=vmem, size = 0x4000, scoped, tag = 'output window, operand 0, single buffered']
    %7 = vsyncpa [#allocation3], 0
    %8 = vsyncpa [#allocation6], 0
    %9 = vsyncpa [#allocation4], 0
    // Predicated region
    $region2: #{tpu_custom_call.1} parent=1 // pred_check
      _
    $region3: #{tpu_custom_call.1} parent=1 // pred_check_branch
      %11 = sbr.rel (0) target = $region5
    $region4: #{tpu_custom_call.1} parent=1 // pred_region
      %s13 = ssub.s32 512, 512
      %14 = vsyncadd [#allocation3], %s13
      %s15 = sshll.u32 [#allocation2], 4
      %s16 = int_to_ptr.vmem [resolvable:$true] %s15
      %21 = dma.hbm_to_vmem [thread:$0]  %s0, 512, %s16, [#allocation3], 128, 128, 8
    $region5: #{tpu_custom_call.1} parent=1 // pred_fallthru
      _
    // Predicated region
    $region6: #{tpu_custom_call.1} parent=1 // pred_check
      _
    $region7: #{tpu_custom_call.1} parent=1 // pred_check_branch
      %23 = sbr.rel (0) target = $region9
    $region8: #{tpu_custom_call.1} parent=1 // pred_region
      %s25 = ssub.s32 2048, 2048
      %26 = vsyncadd [#allocation6], %s25
      %s27 = sshll.u32 [#allocation5], 4
      %s28 = int_to_ptr.vmem [resolvable:$true] %s27
      %33 = dma.hbm_to_vmem [thread:$0]  %s1, 2048, %s28, [#allocation6], 128, 128, 8
    $region9: #{tpu_custom_call.1} parent=1 // pred_fallthru
      _
    // Predicated region
    $region10: #{tpu_custom_call.1} parent=1 // pred_check
      _
    $region11: #{tpu_custom_call.1} parent=1 // pred_check_branch
      %35 = sbr.rel (0) target = $region13
    $region12: #{tpu_custom_call.1} parent=1 // pred_region
      %36 = dma.done [#allocation3], 512
    $region13: #{tpu_custom_call.1} parent=1 // pred_fallthru
      _
    // Predicated region
    $region14: #{tpu_custom_call.1} parent=1 // pred_check
      _
    $region15: #{tpu_custom_call.1} parent=1 // pred_check_branch
      %38 = sbr.rel (0) target = $region17
    $region16: #{tpu_custom_call.1} parent=1 // pred_region
      %39 = dma.done [#allocation6], 2048
    $region17: #{tpu_custom_call.1} parent=1 // pred_fallthru
      _
    %v40 = vld [vmem:[#allocation2] sm:$0xff]
    %v41 = vld [vmem:[#allocation2 + $0x8] sm:$0xff]
    %v42 = vld [vmem:[#allocation2 + $0x10] sm:$0xff]
    %v43 = vld [vmem:[#allocation2 + $0x18] sm:$0xff]
    %v44 = vld [vmem:[#allocation5] sm:$0xff]
    %v45 = vld [vmem:[#allocation5 + $0x8] sm:$0xff]
    %v46 = vld [vmem:[#allocation5 + $0x10] sm:$0xff]
    %v47 = vld [vmem:[#allocation5 + $0x18] sm:$0xff]
    %v48 = vld [vmem:[#allocation5 + $0x20] sm:$0xff]
    %v49 = vld [vmem:[#allocation5 + $0x28] sm:$0xff]
    %v50 = vld [vmem:[#allocation5 + $0x30] sm:$0xff]
    %v51 = vld [vmem:[#allocation5 + $0x38] sm:$0xff]
    %v52 = vld [vmem:[#allocation5 + $0x40] sm:$0xff]
    %v53 = vld [vmem:[#allocation5 + $0x48] sm:$0xff]
    %v54 = vld [vmem:[#allocation5 + $0x50] sm:$0xff]
    %v55 = vld [vmem:[#allocation5 + $0x58] sm:$0xff]
    %v56 = vld [vmem:[#allocation5 + $0x60] sm:$0xff]
    %v57 = vld [vmem:[#allocation5 + $0x68] sm:$0xff]
    %v58 = vld [vmem:[#allocation5 + $0x70] sm:$0xff]
    %v59 = vld [vmem:[#allocation5 + $0x78] sm:$0xff]
    %60 = vmatprep.subr.mxu0 0.0
    %61 = vmatpush1.msra.mxu0 %v44
    %62 = vmatprep.subr.mxu0 0.0
    %63 = vmatpush1.msra.mxu0 %v45
    %64 = vmatprep.subr.mxu0 0.0
    %65 = vmatpush1.msra.mxu0 %v46
    %66 = vmatprep.subr.mxu0 0.0
    %67 = vmatpush1.msra.mxu0 %v47
    %68 = vmatprep.subr.mxu0 0.0
    %69 = vmatpush1.msra.mxu0 %v48
    %70 = vmatprep.subr.mxu0 0.0
    %71 = vmatpush1.msra.mxu0 %v49
    %72 = vmatprep.subr.mxu0 0.0
    %73 = vmatpush1.msra.mxu0 %v50
    %74 = vmatprep.subr.mxu0 0.0
    %75 = vmatpush1.msra.mxu0 %v51
    %76 = vmatprep.subr.mxu0 0.0
    %77 = vmatpush1.msra.mxu0 %v52
    %78 = vmatprep.subr.mxu0 0.0
    %79 = vmatpush1.msra.mxu0 %v53
    %80 = vmatprep.subr.mxu0 0.0
    %81 = vmatpush1.msra.mxu0 %v54
    %82 = vmatprep.subr.mxu0 0.0
    %83 = vmatpush1.msra.mxu0 %v55
    %84 = vmatprep.subr.mxu0 0.0
    %85 = vmatpush1.msra.mxu0 %v56
    %86 = vmatprep.subr.mxu0 0.0
    %87 = vmatpush1.msra.mxu0 %v57
    %88 = vmatprep.subr.mxu0 0.0
    %89 = vmatpush1.msra.mxu0 %v58
    %90 = vmatprep.subr.mxu0 0.0
    %91 = vmatpush1.msra.mxu0 %v59
    %92 = vmatprep.subr.mxu0 0.0
    %93 = vmatpush1.msra.mxu0 0.0
    %94 = vmatprep.subr.mxu0 0.0
    %95 = vmatpush1.msra.mxu0 0.0
    %96 = vmatprep.subr.mxu0 0.0
    %97 = vmatpush1.msra.mxu0 0.0
    %98 = vmatprep.subr.mxu0 0.0
    %99 = vmatpush1.msra.mxu0 0.0
    %100 = vmatprep.subr.mxu0 0.0
    %101 = vmatpush1.msra.mxu0 0.0
    %102 = vmatprep.subr.mxu0 0.0
    %103 = vmatpush1.msra.mxu0 0.0
    %104 = vmatprep.subr.mxu0 0.0
    %105 = vmatpush1.msra.mxu0 0.0
    %106 = vmatprep.subr.mxu0 0.0
    %107 = vmatpush1.msra.mxu0 0.0
    %108 = vmatprep.subr.mxu0 0.0
    %109 = vmatpush1.msra.mxu0 0.0
    %110 = vmatprep.subr.mxu0 0.0
    %111 = vmatpush1.msra.mxu0 0.0
    %112 = vmatprep.subr.mxu0 0.0
    %113 = vmatpush1.msra.mxu0 0.0
    %114 = vmatprep.subr.mxu0 0.0
    %115 = vmatpush1.msra.mxu0 0.0
    %116 = vmatprep.subr.mxu0 0.0
    %117 = vmatpush1.msra.mxu0 0.0
    %118 = vmatprep.subr.mxu0 0.0
    %119 = vmatpush1.msra.mxu0 0.0
    %120 = vmatprep.subr.mxu0 0.0
    %121 = vmatpush1.msra.mxu0 0.0
    %122 = vmatprep.subr.mxu0 0.0
    %123 = vmatpush1.msra.mxu0 0.0
    %124 = vmatprep.mubr.f32.mxu0 0.0
    %125 = vmatmul.mubr.f32.gmra.mrb[0].mxu0 %v40
    %v126 = vpop.f32.mrb[0].mxu0
    %v127 = vadd.f32 0.0, %v126
    %v128 = vpop.f32.mrb[0].mxu0
    %129 = vmatprep.mubr.f32.mxu0 0.0
    %130 = vmatmul.mubr.f32.gmra.mrb[0].mxu0 %v41
    %v131 = vpop.f32.mrb[0].mxu0
    %v132 = vadd.f32 0.0, %v131
    %v133 = vpop.f32.mrb[0].mxu0
    %134 = vmatprep.mubr.f32.mxu0 0.0
    %135 = vmatmul.mubr.f32.gmra.mrb[0].mxu0 %v42
    %v136 = vpop.f32.mrb[0].mxu0
    %v137 = vadd.f32 0.0, %v136
    %v138 = vpop.f32.mrb[0].mxu0
    %139 = vmatprep.mubr.f32.mxu0 0.0
    %140 = vmatmul.mubr.f32.gmra.mrb[0].mxu0 %v43
    %v141 = vpop.f32.mrb[0].mxu0
    %v142 = vadd.f32 0.0, %v141
    %v143 = vpop.f32.mrb[0].mxu0
    %144 = vdwg.mxu0
    %145 = vst [vmem:[#allocation7] sm:$0xff] %v127
    %146 = vst [vmem:[#allocation7 + $0x8] sm:$0xff] %v132
    %147 = vst [vmem:[#allocation7 + $0x10] sm:$0xff] %v137
    %148 = vst [vmem:[#allocation7 + $0x18] sm:$0xff] %v142
    // Predicated region
    $region18: #{tpu_custom_call.1} parent=1 // pred_check
      _
    $region19: #{tpu_custom_call.1} parent=1 // pred_check_branch
      %150 = sbr.rel (0) target = $region21
    $region20: #{tpu_custom_call.1} parent=1 // pred_region
      %s152 = ssub.s32 512, 512
      %153 = vsyncadd [#allocation4], %s152
      %s154 = sshll.u32 [#allocation7], 4
      %s155 = int_to_ptr.vmem [resolvable:$true] %s154
      %160 = dma.vmem_to_hbm [thread:$0]  %s155, 512, %s2, [#allocation4], 128, 128, 8
    $region21: #{tpu_custom_call.1} parent=1 // pred_fallthru
      _
    // Predicated region
    $region22: #{tpu_custom_call.1} parent=1 // pred_check
      _
    $region23: #{tpu_custom_call.1} parent=1 // pred_check_branch
      %162 = sbr.rel (0) target = $region25
    $region24: #{tpu_custom_call.1} parent=1 // pred_region
      %163 = dma.done [#allocation4], 512
    $region25: #{tpu_custom_call.1} parent=1 // pred_fallthru
      _
    %164 = vsyncpa [#allocation3], 1
    %165 = vsyncpa [#allocation6], 1
    %166 = vsyncpa [#allocation4], 1

</llo_original>
